<compile_context>
chip_gen: v7x
topology: tpu7x:2x2x1
jax: 0.10.0
libtpu: 0.0.40
codegen_flags: <defaults>
</compile_context>

<pallas_src>
import jax
import jax.numpy as jnp
from jax.experimental import pallas as pl
from jax.experimental.pallas import tpu as pltpu


# ----------------------------------------------------------------------------
# Fused kernel: one grid step = one batch element b.
#   qkv    = x @ W_qkv_all + b_qkv         (single matmul, N = 3*H*E, bf16 MXU)
#   per head h (static unroll):
#     s    = q_h @ k_h^T                    (no scaling, like the reference)
#     attn = softmax(s)                     (f32 stats, approx reciprocal)
#     o_h  = attn @ v_h
#   out[b] = concat_h(o_h) @ W_fc + b_fc    (K = H*E lane-dense, single push)
# ----------------------------------------------------------------------------
def _mha_fused_kernel(x_ref, wqkv_ref, bqkv_ref, wfc_ref, bfc_ref, out_ref):
    x = x_ref[0]                                   # (S, E) f32
    E = x.shape[-1]
    HE = wfc_ref.shape[0]                          # H * E
    H = HE // E

    # Fused Q/K/V projection for ALL heads at once (lane-dense N = 3*H*E).
    # bf16 operands, f32 accumulation; bias added in f32.
    qkv = jnp.dot(x.astype(jnp.bfloat16), wqkv_ref[...],
                  preferred_element_type=jnp.float32)
    qkv = qkv + bqkv_ref[...]                      # (S, 3*H*E) f32

    head_outs = []
    for h in range(H):   # small static trip-count -> full unroll at trace time
        q = qkv[:, 0 * HE + h * E:0 * HE + (h + 1) * E]   # (S, E)
        k = qkv[:, 1 * HE + h * E:1 * HE + (h + 1) * E]   # (S, E)
        v = qkv[:, 2 * HE + h * E:2 * HE + (h + 1) * E]   # (S, E)

        # Q @ K^T without materializing K^T (contract the last dim of both).
        s = jax.lax.dot_general(
            q.astype(jnp.bfloat16), k.astype(jnp.bfloat16),
            dimension_numbers=(((1,), (1,)), ((), ())),
            preferred_element_type=jnp.float32)           # (S, S) f32

        # Numerically-stable softmax in f32 (NO 1/sqrt(E) scale -- matches the
        # reference PyTorch module). Normalization via the EUP reciprocal.
        m = jnp.max(s, axis=-1, keepdims=True)
        p = jnp.exp(s - m)
        denom = jnp.sum(p, axis=-1, keepdims=True)
        attn = p * pl.reciprocal(denom, approx=True)

        head_outs.append(
            jnp.dot(attn.astype(jnp.bfloat16), v.astype(jnp.bfloat16),
                    preferred_element_type=jnp.float32))  # (S, E) f32

    # Concat heads along the lane axis (K = H*E, lane-dense) and do the final
    # fc as one MXU push, writing straight into the output block (no scratch).
    concat = jnp.concatenate(head_outs, axis=-1)          # (S, H*E) f32
    out = jnp.dot(concat.astype(jnp.bfloat16), wfc_ref[...],
                  preferred_element_type=jnp.float32) + bfc_ref[...]
    out_ref[0] = out

    # TODO(synk): for large S (>= ~1024) add a query-tile "parallel" grid axis
    #             (keeps both v7x TensorCores busy at B=1) and flash-style KV
    #             tiling with an online softmax so the (S, S) score tile never
    #             materializes; unnecessary at these shapes.


# ----------------------------------------------------------------------------
# Wrapper: grid = (B,), weights resident in VMEM across the whole grid.
# ----------------------------------------------------------------------------
def multi_head_attention(feature, packed):
    """feature: (B, S, E) float32. packed: output of pack_params()."""
    B, S, E = feature.shape
    HE3 = packed["w_qkv"].shape[1]     # 3 * H * E
    HE = packed["w_fc"].shape[0]       # H * E

    return pl.pallas_call(
        _mha_fused_kernel,
        out_shape=jax.ShapeDtypeStruct((B, S, E), jnp.float32),
        grid=(B,),
        in_specs=[
            pl.BlockSpec((1, S, E), lambda b: (b, 0, 0)),     # feature[b]
            # Constant block indices -> weights/biases are DMA'd once and stay
            # VMEM-resident for every grid step (no factor-B re-fetch).
            pl.BlockSpec((E, HE3), lambda b: (0, 0)),          # W_qkv (bf16)
            pl.BlockSpec((1, HE3), lambda b: (0, 0)),          # b_qkv (f32)
            pl.BlockSpec((HE, E), lambda b: (0, 0)),           # W_fc  (bf16)
            pl.BlockSpec((1, E), lambda b: (0, 0)),            # b_fc  (f32)
        ],
        out_specs=pl.BlockSpec((1, S, E), lambda b: (b, 0, 0)),
        compiler_params=pltpu.CompilerParams(
            dimension_semantics=("parallel",),
            # Above the 16/32 MiB scoped defaults for headroom at larger S,
            # and below v7x's 64 MiB physical VMEM.
            vmem_limit_bytes=48 * 1024 * 1024,
        ),
    )(feature, packed["w_qkv"], packed["b_qkv"], packed["w_fc"], packed["b_fc"])


# ----------------------------------------------------------------------------
# One-time parameter packing (done at load time, NOT per forward call):
#   W_qkv : (E, 3*H*E) bf16, columns laid out [Q_h0..Q_hH-1 | K_... | V_...]
#   b_qkv : (1, 3*H*E) f32
#   W_fc  : (H*E, E)   bf16   (rows are head-major, matching the concat order)
#   b_fc  : (1, E)     f32
# ----------------------------------------------------------------------------
def pack_params(params):
    H, E, _ = params["wq"].shape

    def stack(w):  # (H, E, E) -> (E, H*E), column index = h*E + e
        return jnp.transpose(w, (1, 0, 2)).reshape(E, H * E)

    w_qkv = jnp.concatenate(
        [stack(params["wq"]), stack(params["wk"]), stack(params["wv"])],
        axis=-1).astype(jnp.bfloat16)                       # (E, 3*H*E)
    b_qkv = jnp.concatenate(
        [params["bq"].reshape(1, H * E),
         params["bk"].reshape(1, H * E),
         params["bv"].reshape(1, H * E)], axis=-1)           # (1, 3*H*E) f32
    return {
        "w_qkv": w_qkv,
        "b_qkv": b_qkv,
        "w_fc": params["w_fc"].astype(jnp.bfloat16),         # (H*E, E)
        "b_fc": params["b_fc"],                              # (1, E) f32
    }


# ----------------------------------------------------------------------------
# Deterministic parameter init (mimics nn.Linear's U(-1/sqrt(fan_in), ...))
# ----------------------------------------------------------------------------
def init_params(key, embed_size, num_heads):
    E, H = embed_size, num_heads
    ks = jax.random.split(key, 8)
    lim = 1.0 / jnp.sqrt(E)
    lim_fc = 1.0 / jnp.sqrt(H * E)
    u = lambda k, shape, l: jax.random.uniform(k, shape, jnp.float32, -l, l)
    return {
        "wq": u(ks[0], (H, E, E), lim),
        "wk": u(ks[1], (H, E, E), lim),
        "wv": u(ks[2], (H, E, E), lim),
        "bq": u(ks[3], (H, 1, E), lim),
        "bk": u(ks[4], (H, 1, E), lim),
        "bv": u(ks[5], (H, 1, E), lim),
        "w_fc": u(ks[6], (H * E, E), lim_fc),
        "b_fc": u(ks[7], (1, E), lim_fc),
    }


# ----------------------------------------------------------------------------
# Pure-JAX fp32 reference (same math as the PyTorch module).
# ----------------------------------------------------------------------------
def reference(feature, params):
    heads = []
    H = params["wq"].shape[0]
    for h in range(H):
        q = feature @ params["wq"][h] + params["bq"][h]
        k = feature @ params["wk"][h] + params["bk"][h]
        v = feature @ params["wv"][h] + params["bv"][h]
        attn = jax.nn.softmax(q @ jnp.swapaxes(k, 1, 2), axis=-1)
        heads.append(attn @ v)
    concat = jnp.concatenate(heads, axis=-1)
    return concat @ params["w_fc"] + params["b_fc"]


if __name__ == "__main__":
    # S = 16 (multiple of 16) keeps bf16 sublane packing unpadded;
    # H * E = 128 makes the head-concat / fc contraction lane-dense.
    B, S, E, H = 2, 16, 32, 4
    key = jax.random.PRNGKey(0)
    k_x, k_p = jax.random.split(key)
    feature = jax.random.normal(k_x, (B, S, E), jnp.float32)
    params = init_params(k_p, E, H)
    packed = pack_params(params)   # packed / bf16-cast once, reused per call

    out = multi_head_attention(feature, packed)
    out = jax.block_until_ready(out)

    ref = reference(feature, params)
    assert out.shape == (B, S, E)
    # Tolerance accommodates bf16 MXU operands + the EUP approximate
    # reciprocal vs. the fp32 reference.
    max_err = float(jnp.max(jnp.abs(out - ref)))
    assert jnp.allclose(out, ref, atol=5e-2, rtol=5e-2), max_err

    print("KERNEL_OK")
</pallas_src>

<mosaic_0001>
module attributes {stable_mosaic.version = 11 : i64} {
  func.func @_mha_fused_kernel(%arg0: i32, %arg1: memref<1x16x32xf32, #tpu.memory_space<vmem>>, %arg2: memref<32x384xbf16, #tpu.memory_space<vmem>>, %arg3: memref<1x384xf32, #tpu.memory_space<vmem>>, %arg4: memref<128x32xbf16, #tpu.memory_space<vmem>>, %arg5: memref<1x32xf32, #tpu.memory_space<vmem>>, %arg6: memref<1x16x32xf32, #tpu.memory_space<vmem>>) attributes {dimension_semantics = [#tpu.dimension_semantics<parallel>], iteration_bounds = array<i64: 2>, scalar_prefetch = 0 : i64, scratch_operands = 0 : i64, tpu.core_type = #tpu.core_type<tc>, window_params = [{transform_indices = @transform_0, window_bounds = array<i64: 1, 16, 32>}, {pipeline_mode = #tpu.pipeline_mode<synchronous>, transform_indices = @transform_1, window_bounds = array<i64: 32, 384>}, {pipeline_mode = #tpu.pipeline_mode<synchronous>, transform_indices = @transform_2, window_bounds = array<i64: 1, 384>}, {pipeline_mode = #tpu.pipeline_mode<synchronous>, transform_indices = @transform_3, window_bounds = array<i64: 128, 32>}, {pipeline_mode = #tpu.pipeline_mode<synchronous>, transform_indices = @transform_4, window_bounds = array<i64: 1, 32>}, {transform_indices = @transform_5, window_bounds = array<i64: 1, 16, 32>}]} {
    %c0 = arith.constant 0 : index
    %c0_0 = arith.constant 0 : index
    %c0_1 = arith.constant 0 : index
    %0 = vector.load %arg1[%c0, %c0_0, %c0_1] : memref<1x16x32xf32, #tpu.memory_space<vmem>>, vector<1x16x32xf32>
    %1 = vector.shape_cast %0 : vector<1x16x32xf32> to vector<16x32xf32>
    %2 = arith.truncf %1 : vector<16x32xf32> to vector<16x32xbf16>
    %c0_2 = arith.constant 0 : index
    %c0_3 = arith.constant 0 : index
    %3 = vector.load %arg2[%c0_2, %c0_3] : memref<32x384xbf16, #tpu.memory_space<vmem>>, vector<32x384xbf16>
    %cst = arith.constant dense<0.000000e+00> : vector<16x384xf32>
    %4 = tpu.matmul %2, %3, %cst {dimension_numbers = #tpu.dot_dimension_numbers<[1], [0], [0], [1], [0, 0, 1, 1], [], []>} : vector<16x32xbf16>, vector<32x384xbf16>, vector<16x384xf32> -> vector<16x384xf32>
    %c0_4 = arith.constant 0 : index
    %c0_5 = arith.constant 0 : index
    %5 = vector.load %arg3[%c0_4, %c0_5] : memref<1x384xf32, #tpu.memory_space<vmem>>, vector<1x384xf32>
    %6 = vector.broadcast %5 : vector<1x384xf32> to vector<16x384xf32>
    %7 = arith.addf %4, %6 : vector<16x384xf32>
    %8 = vector.extract_strided_slice %7 {offsets = [0, 0], sizes = [16, 32], strides = [1, 1]} : vector<16x384xf32> to vector<16x32xf32>
    %9 = vector.extract_strided_slice %7 {offsets = [0, 128], sizes = [16, 32], strides = [1, 1]} : vector<16x384xf32> to vector<16x32xf32>
    %10 = vector.extract_strided_slice %7 {offsets = [0, 256], sizes = [16, 32], strides = [1, 1]} : vector<16x384xf32> to vector<16x32xf32>
    %11 = arith.truncf %8 : vector<16x32xf32> to vector<16x32xbf16>
    %12 = arith.truncf %9 : vector<16x32xf32> to vector<16x32xbf16>
    %cst_6 = arith.constant dense<0.000000e+00> : vector<16x16xf32>
    %13 = tpu.matmul %11, %12, %cst_6 {dimension_numbers = #tpu.dot_dimension_numbers<[1], [1], [0], [0], [0, 0, 1, 0], [], []>} : vector<16x32xbf16>, vector<16x32xbf16>, vector<16x16xf32> -> vector<16x16xf32>
    %cst_7 = arith.constant dense<0xFF800000> : vector<16xf32>
    %14 = vector.multi_reduction <maximumf>, %13, %cst_7 [1] : vector<16x16xf32> to vector<16xf32>
    %15 = vector.shape_cast %14 : vector<16xf32> to vector<16x1xf32>
    %16 = vector.broadcast %15 : vector<16x1xf32> to vector<16x16xf32>
    %17 = arith.subf %13, %16 : vector<16x16xf32>
    %18 = math.exp %17 : vector<16x16xf32>
    %cst_8 = arith.constant dense<0.000000e+00> : vector<16xf32>
    %19 = vector.multi_reduction <add>, %18, %cst_8 [1] : vector<16x16xf32> to vector<16xf32>
    %20 = vector.shape_cast %19 : vector<16xf32> to vector<16x1xf32>
    %21 = tpu.reciprocal %20 {approx = true} : vector<16x1xf32> -> vector<16x1xf32>
    %22 = vector.broadcast %21 : vector<16x1xf32> to vector<16x16xf32>
    %23 = arith.mulf %18, %22 : vector<16x16xf32>
    %24 = arith.truncf %23 : vector<16x16xf32> to vector<16x16xbf16>
    %25 = arith.truncf %10 : vector<16x32xf32> to vector<16x32xbf16>
    %cst_9 = arith.constant dense<0.000000e+00> : vector<16x32xf32>
    %26 = tpu.matmul %24, %25, %cst_9 {dimension_numbers = #tpu.dot_dimension_numbers<[1], [0], [0], [1], [0, 0, 1, 1], [], []>} : vector<16x16xbf16>, vector<16x32xbf16>, vector<16x32xf32> -> vector<16x32xf32>
    %27 = vector.extract_strided_slice %7 {offsets = [0, 32], sizes = [16, 32], strides = [1, 1]} : vector<16x384xf32> to vector<16x32xf32>
    %28 = vector.extract_strided_slice %7 {offsets = [0, 160], sizes = [16, 32], strides = [1, 1]} : vector<16x384xf32> to vector<16x32xf32>
    %29 = vector.extract_strided_slice %7 {offsets = [0, 288], sizes = [16, 32], strides = [1, 1]} : vector<16x384xf32> to vector<16x32xf32>
    %30 = arith.truncf %27 : vector<16x32xf32> to vector<16x32xbf16>
    %31 = arith.truncf %28 : vector<16x32xf32> to vector<16x32xbf16>
    %cst_10 = arith.constant dense<0.000000e+00> : vector<16x16xf32>
    %32 = tpu.matmul %30, %31, %cst_10 {dimension_numbers = #tpu.dot_dimension_numbers<[1], [1], [0], [0], [0, 0, 1, 0], [], []>} : vector<16x32xbf16>, vector<16x32xbf16>, vector<16x16xf32> -> vector<16x16xf32>
    %cst_11 = arith.constant dense<0xFF800000> : vector<16xf32>
    %33 = vector.multi_reduction <maximumf>, %32, %cst_11 [1] : vector<16x16xf32> to vector<16xf32>
    %34 = vector.shape_cast %33 : vector<16xf32> to vector<16x1xf32>
    %35 = vector.broadcast %34 : vector<16x1xf32> to vector<16x16xf32>
    %36 = arith.subf %32, %35 : vector<16x16xf32>
    %37 = math.exp %36 : vector<16x16xf32>
    %cst_12 = arith.constant dense<0.000000e+00> : vector<16xf32>
    %38 = vector.multi_reduction <add>, %37, %cst_12 [1] : vector<16x16xf32> to vector<16xf32>
    %39 = vector.shape_cast %38 : vector<16xf32> to vector<16x1xf32>
    %40 = tpu.reciprocal %39 {approx = true} : vector<16x1xf32> -> vector<16x1xf32>
    %41 = vector.broadcast %40 : vector<16x1xf32> to vector<16x16xf32>
    %42 = arith.mulf %37, %41 : vector<16x16xf32>
    %43 = arith.truncf %42 : vector<16x16xf32> to vector<16x16xbf16>
    %44 = arith.truncf %29 : vector<16x32xf32> to vector<16x32xbf16>
    %cst_13 = arith.constant dense<0.000000e+00> : vector<16x32xf32>
    %45 = tpu.matmul %43, %44, %cst_13 {dimension_numbers = #tpu.dot_dimension_numbers<[1], [0], [0], [1], [0, 0, 1, 1], [], []>} : vector<16x16xbf16>, vector<16x32xbf16>, vector<16x32xf32> -> vector<16x32xf32>
    %46 = vector.extract_strided_slice %7 {offsets = [0, 64], sizes = [16, 32], strides = [1, 1]} : vector<16x384xf32> to vector<16x32xf32>
    %47 = vector.extract_strided_slice %7 {offsets = [0, 192], sizes = [16, 32], strides = [1, 1]} : vector<16x384xf32> to vector<16x32xf32>
    %48 = vector.extract_strided_slice %7 {offsets = [0, 320], sizes = [16, 32], strides = [1, 1]} : vector<16x384xf32> to vector<16x32xf32>
    %49 = arith.truncf %46 : vector<16x32xf32> to vector<16x32xbf16>
    %50 = arith.truncf %47 : vector<16x32xf32> to vector<16x32xbf16>
    %cst_14 = arith.constant dense<0.000000e+00> : vector<16x16xf32>
    %51 = tpu.matmul %49, %50, %cst_14 {dimension_numbers = #tpu.dot_dimension_numbers<[1], [1], [0], [0], [0, 0, 1, 0], [], []>} : vector<16x32xbf16>, vector<16x32xbf16>, vector<16x16xf32> -> vector<16x16xf32>
    %cst_15 = arith.constant dense<0xFF800000> : vector<16xf32>
    %52 = vector.multi_reduction <maximumf>, %51, %cst_15 [1] : vector<16x16xf32> to vector<16xf32>
    %53 = vector.shape_cast %52 : vector<16xf32> to vector<16x1xf32>
    %54 = vector.broadcast %53 : vector<16x1xf32> to vector<16x16xf32>
    %55 = arith.subf %51, %54 : vector<16x16xf32>
    %56 = math.exp %55 : vector<16x16xf32>
    %cst_16 = arith.constant dense<0.000000e+00> : vector<16xf32>
    %57 = vector.multi_reduction <add>, %56, %cst_16 [1] : vector<16x16xf32> to vector<16xf32>
    %58 = vector.shape_cast %57 : vector<16xf32> to vector<16x1xf32>
    %59 = tpu.reciprocal %58 {approx = true} : vector<16x1xf32> -> vector<16x1xf32>
    %60 = vector.broadcast %59 : vector<16x1xf32> to vector<16x16xf32>
    %61 = arith.mulf %56, %60 : vector<16x16xf32>
    %62 = arith.truncf %61 : vector<16x16xf32> to vector<16x16xbf16>
    %63 = arith.truncf %48 : vector<16x32xf32> to vector<16x32xbf16>
    %cst_17 = arith.constant dense<0.000000e+00> : vector<16x32xf32>
    %64 = tpu.matmul %62, %63, %cst_17 {dimension_numbers = #tpu.dot_dimension_numbers<[1], [0], [0], [1], [0, 0, 1, 1], [], []>} : vector<16x16xbf16>, vector<16x32xbf16>, vector<16x32xf32> -> vector<16x32xf32>
    %65 = vector.extract_strided_slice %7 {offsets = [0, 96], sizes = [16, 32], strides = [1, 1]} : vector<16x384xf32> to vector<16x32xf32>
    %66 = vector.extract_strided_slice %7 {offsets = [0, 224], sizes = [16, 32], strides = [1, 1]} : vector<16x384xf32> to vector<16x32xf32>
    %67 = vector.extract_strided_slice %7 {offsets = [0, 352], sizes = [16, 32], strides = [1, 1]} : vector<16x384xf32> to vector<16x32xf32>
    %68 = arith.truncf %65 : vector<16x32xf32> to vector<16x32xbf16>
    %69 = arith.truncf %66 : vector<16x32xf32> to vector<16x32xbf16>
    %cst_18 = arith.constant dense<0.000000e+00> : vector<16x16xf32>
    %70 = tpu.matmul %68, %69, %cst_18 {dimension_numbers = #tpu.dot_dimension_numbers<[1], [1], [0], [0], [0, 0, 1, 0], [], []>} : vector<16x32xbf16>, vector<16x32xbf16>, vector<16x16xf32> -> vector<16x16xf32>
    %cst_19 = arith.constant dense<0xFF800000> : vector<16xf32>
    %71 = vector.multi_reduction <maximumf>, %70, %cst_19 [1] : vector<16x16xf32> to vector<16xf32>
    %72 = vector.shape_cast %71 : vector<16xf32> to vector<16x1xf32>
    %73 = vector.broadcast %72 : vector<16x1xf32> to vector<16x16xf32>
    %74 = arith.subf %70, %73 : vector<16x16xf32>
    %75 = math.exp %74 : vector<16x16xf32>
    %cst_20 = arith.constant dense<0.000000e+00> : vector<16xf32>
    %76 = vector.multi_reduction <add>, %75, %cst_20 [1] : vector<16x16xf32> to vector<16xf32>
    %77 = vector.shape_cast %76 : vector<16xf32> to vector<16x1xf32>
    %78 = tpu.reciprocal %77 {approx = true} : vector<16x1xf32> -> vector<16x1xf32>
    %79 = vector.broadcast %78 : vector<16x1xf32> to vector<16x16xf32>
    %80 = arith.mulf %75, %79 : vector<16x16xf32>
    %81 = arith.truncf %80 : vector<16x16xf32> to vector<16x16xbf16>
    %82 = arith.truncf %67 : vector<16x32xf32> to vector<16x32xbf16>
    %cst_21 = arith.constant dense<0.000000e+00> : vector<16x32xf32>
    %83 = tpu.matmul %81, %82, %cst_21 {dimension_numbers = #tpu.dot_dimension_numbers<[1], [0], [0], [1], [0, 0, 1, 1], [], []>} : vector<16x16xbf16>, vector<16x32xbf16>, vector<16x32xf32> -> vector<16x32xf32>
    %84 = tpu.concatenate %26, %45, %64, %83 in 1 : vector<16x32xf32>, vector<16x32xf32>, vector<16x32xf32>, vector<16x32xf32> -> vector<16x128xf32>
    %85 = arith.truncf %84 : vector<16x128xf32> to vector<16x128xbf16>
    %c0_22 = arith.constant 0 : index
    %c0_23 = arith.constant 0 : index
    %86 = vector.load %arg4[%c0_22, %c0_23] : memref<128x32xbf16, #tpu.memory_space<vmem>>, vector<128x32xbf16>
    %cst_24 = arith.constant dense<0.000000e+00> : vector<16x32xf32>
    %87 = tpu.matmul %85, %86, %cst_24 {dimension_numbers = #tpu.dot_dimension_numbers<[1], [0], [0], [1], [0, 0, 1, 1], [], []>} : vector<16x128xbf16>, vector<128x32xbf16>, vector<16x32xf32> -> vector<16x32xf32>
    %c0_25 = arith.constant 0 : index
    %c0_26 = arith.constant 0 : index
    %88 = vector.load %arg5[%c0_25, %c0_26] : memref<1x32xf32, #tpu.memory_space<vmem>>, vector<1x32xf32>
    %89 = vector.broadcast %88 : vector<1x32xf32> to vector<16x32xf32>
    %90 = arith.addf %87, %89 : vector<16x32xf32>
    %c0_27 = arith.constant 0 : index
    %c0_28 = arith.constant 0 : index
    %c0_29 = arith.constant 0 : index
    %91 = vector.load %arg6[%c0_27, %c0_28, %c0_29] : memref<1x16x32xf32, #tpu.memory_space<vmem>>, vector<1x16x32xf32>
    %92 = vector.shape_cast %91 : vector<1x16x32xf32> to vector<16x32xf32>
    %93 = vector.shape_cast %90 : vector<16x32xf32> to vector<1x16x32xf32>
    tpu.vector_store %arg6[%c0_27, %c0_28, %c0_29], %93 {strides = array<i32>} : memref<1x16x32xf32, #tpu.memory_space<vmem>>, vector<1x16x32xf32>,
    return
  }
  func.func @transform_0(%arg0: i32) -> (i32, i32, i32) {
    %c0_i32 = arith.constant 0 : i32
    %c0_i32_0 = arith.constant 0 : i32
    %c0_i32_1 = arith.constant 0 : i32
    return %arg0, %c0_i32, %c0_i32_0 : i32, i32, i32
  }
  func.func @transform_1(%arg0: i32) -> (i32, i32) {
    %c0_i32 = arith.constant 0 : i32
    %c0_i32_0 = arith.constant 0 : i32
    %c0_i32_1 = arith.constant 0 : i32
    return %c0_i32, %c0_i32_0 : i32, i32
  }
  func.func @transform_2(%arg0: i32) -> (i32, i32) {
    %c0_i32 = arith.constant 0 : i32
    %c0_i32_0 = arith.constant 0 : i32
    %c0_i32_1 = arith.constant 0 : i32
    return %c0_i32, %c0_i32_0 : i32, i32
  }
  func.func @transform_3(%arg0: i32) -> (i32, i32) {
    %c0_i32 = arith.constant 0 : i32
    %c0_i32_0 = arith.constant 0 : i32
    %c0_i32_1 = arith.constant 0 : i32
    return %c0_i32, %c0_i32_0 : i32, i32
  }
  func.func @transform_4(%arg0: i32) -> (i32, i32) {
    %c0_i32 = arith.constant 0 : i32
    %c0_i32_0 = arith.constant 0 : i32
    %c0_i32_1 = arith.constant 0 : i32
    return %c0_i32, %c0_i32_0 : i32, i32
  }
  func.func @transform_5(%arg0: i32) -> (i32, i32, i32) {
    %c0_i32 = arith.constant 0 : i32
    %c0_i32_0 = arith.constant 0 : i32
    %c0_i32_1 = arith.constant 0 : i32
    return %arg0, %c0_i32, %c0_i32_0 : i32, i32, i32
  }
}

</mosaic_0001>

<llo_original>
// kernel: tpu_custom_call.1
$region0: #{tpu_custom_call.1}
  #allocation0 [shape = 'u32[]', space=smem, size = 0x4, offset = 0x4, fixed_abs, tag = 'smem constant byte address 0x4 - core index']
  #allocation1 [shape = 'u32[144,128]{1,0:T(1,128)}', space=vmem, size = 0x12000, scoped, tag = 'internal scratch']
  %s0 = inlined_call_operand.vmem [shape: f32[2,16,32], index: 0, kind: input, shape index: {}]
  %s1 = inlined_call_operand.vmem [shape: bf16[32,384], index: 1, kind: input, shape index: {}]
  %s2 = inlined_call_operand.vmem [shape: f32[1,384], index: 2, kind: input, shape index: {}]
  %s3 = inlined_call_operand.vmem [shape: bf16[128,32], index: 3, kind: input, shape index: {}]
  %s4 = inlined_call_operand.vmem [shape: f32[1,32], index: 4, kind: input, shape index: {}]
  %s5 = inlined_call_operand.hbm [shape: f32[2,16,32], index: 5, kind: output, shape index: {}]
  %s6 = sld [smem:[#allocation0]]
  $region53: #{tpu_custom_call.1} parent=0
    _
  %s8 = ssub.s32 1, %s6
  %s9 = scalar_select 0, %s8, %s6
  $region1: #{tpu_custom_call.1} parent=0
    #allocation2 [shape = 'u8[16384]{0}', space=vmem, size = 0x4000, scoped, tag = 'output window, operand 0']
    #allocation3 [shape = 's32[2]{0}', space=sflag, size = 0x8, scoped, tag = 'scoped memory for tpu_custom_call.1']
    %10 = vsyncpa [#allocation3], 0
    %s11 = scalar_lea.sflag [#allocation3], 1
    %12 = vsyncpa %s11, 0
    loop: start=0, step=1, limit=4
    $region2: #{tpu_custom_call.1} parent=1 // loop_pre_header
      _
    $region3: #{tpu_custom_call.1} parent=1 // loop_header
      %s14 = sphi 0, %s18
      %p15 = scmp.ge.s32.totalorder %s14, 4
      %s24 = sphi 0, %s26
      %s27 = sphi 0, %s24
      %s28 = sphi 0, %s27
      %s44 = sphi 0, %s28
      %s48 = sphi 0, %s48
      %s50 = sphi 0, %s48
      %s51 = sphi 0, %s50
      %s65 = sphi 0, %s51
      %s69 = sphi 0, %s69
      %s71 = sphi 0, %s69
      %s72 = sphi 0, %s71
      %s86 = sphi 0, %s72
      %s90 = sphi 0, %s90
      %s92 = sphi 0, %s90
      %s93 = sphi 0, %s92
      %s107 = sphi 0, %s93
      %s111 = sphi 0, %s111
      %s113 = sphi 0, %s111
      %s114 = sphi 0, %s113
      %s128 = sphi 0, %s114
      %s134 = sphi 0, %s136
      %s137 = sphi 0, %s134
      %s138 = sphi 0, %s137
      %s154 = sphi 0, %s138
    $region4: #{tpu_custom_call.1} parent=1 // loop_header_branch
      %17 = sbr.rel (%p15) target = $region8
    $region5: #{tpu_custom_call.1} parent=1 // loop_body
      %s19 = ssub.s32 %s14, 1
      %s20 = ssub.s32 %s14, 2
      %s21 = sadd.s32 %s14, 1
      %s22 = ssub.s32 %s14, %s21
      %p23 = scmp.eq.s32.totalorder %s22, 0
      %s25 = sadd.s32 %s24, 1
      %s26 = scalar_select %p23, %s24, %s25
      %p29 = pneg %p23
      %p30 = scmp.eq.s32.totalorder %s14, 1
      %p31 = por %p29, %p30
      %p32 = scmp.ne.s32.totalorder %s24, %s27
      %p33 = scmp.eq.s32.totalorder %s14, 0
      %p34 = por %p32, %p33
      %p35 = scmp.ne.s32.totalorder %s24, %s27
      %p36 = scmp.eq.s32.totalorder %s19, 1
      %p37 = por %p35, %p36
      %p38 = scmp.ne.s32.totalorder %s27, %s28
      %p39 = scmp.eq.s32.totalorder %s19, 0
      %p40 = por %p38, %p39
      %p41 = scmp.ne.s32.totalorder %s27, %s28
      %p42 = scmp.eq.s32.totalorder %s20, 1
      %p43 = por %p41, %p42
      %p45 = scmp.ne.s32.totalorder %s28, %s44
      %p46 = scmp.eq.s32.totalorder %s20, 0
      %p47 = por %p45, %p46
      %s49 = sadd.s32 %s48, 1
      %p52 = scmp.eq.s32.totalorder %s14, 1
      %p53 = scmp.ne.s32.totalorder %s48, %s50
      %p54 = scmp.eq.s32.totalorder %s14, 0
      %p55 = por %p53, %p54
      %p56 = scmp.ne.s32.totalorder %s48, %s50
      %p57 = scmp.eq.s32.totalorder %s19, 1
      %p58 = por %p56, %p57
      %p59 = scmp.ne.s32.totalorder %s50, %s51
      %p60 = scmp.eq.s32.totalorder %s19, 0
      %p61 = por %p59, %p60
      %p62 = scmp.ne.s32.totalorder %s50, %s51
      %p63 = scmp.eq.s32.totalorder %s20, 1
      %p64 = por %p62, %p63
      %p66 = scmp.ne.s32.totalorder %s51, %s65
      %p67 = scmp.eq.s32.totalorder %s20, 0
      %p68 = por %p66, %p67
      %s70 = sadd.s32 %s69, 1
      %p73 = scmp.eq.s32.totalorder %s14, 1
      %p74 = scmp.ne.s32.totalorder %s69, %s71
      %p75 = scmp.eq.s32.totalorder %s14, 0
      %p76 = por %p74, %p75
      %p77 = scmp.ne.s32.totalorder %s69, %s71
      %p78 = scmp.eq.s32.totalorder %s19, 1
      %p79 = por %p77, %p78
      %p80 = scmp.ne.s32.totalorder %s71, %s72
      %p81 = scmp.eq.s32.totalorder %s19, 0
      %p82 = por %p80, %p81
      %p83 = scmp.ne.s32.totalorder %s71, %s72
      %p84 = scmp.eq.s32.totalorder %s20, 1
      %p85 = por %p83, %p84
      %p87 = scmp.ne.s32.totalorder %s72, %s86
      %p88 = scmp.eq.s32.totalorder %s20, 0
      %p89 = por %p87, %p88
      %s91 = sadd.s32 %s90, 1
      %p94 = scmp.eq.s32.totalorder %s14, 1
      %p95 = scmp.ne.s32.totalorder %s90, %s92
      %p96 = scmp.eq.s32.totalorder %s14, 0
      %p97 = por %p95, %p96
      %p98 = scmp.ne.s32.totalorder %s90, %s92
      %p99 = scmp.eq.s32.totalorder %s19, 1
      %p100 = por %p98, %p99
      %p101 = scmp.ne.s32.totalorder %s92, %s93
      %p102 = scmp.eq.s32.totalorder %s19, 0
      %p103 = por %p101, %p102
      %p104 = scmp.ne.s32.totalorder %s92, %s93
      %p105 = scmp.eq.s32.totalorder %s20, 1
      %p106 = por %p104, %p105
      %p108 = scmp.ne.s32.totalorder %s93, %s107
      %p109 = scmp.eq.s32.totalorder %s20, 0
      %p110 = por %p108, %p109
      %s112 = sadd.s32 %s111, 1
      %p115 = scmp.eq.s32.totalorder %s14, 1
      %p116 = scmp.ne.s32.totalorder %s111, %s113
      %p117 = scmp.eq.s32.totalorder %s14, 0
      %p118 = por %p116, %p117
      %p119 = scmp.ne.s32.totalorder %s111, %s113
      %p120 = scmp.eq.s32.totalorder %s19, 1
      %p121 = por %p119, %p120
      %p122 = scmp.ne.s32.totalorder %s113, %s114
      %p123 = scmp.eq.s32.totalorder %s19, 0
      %p124 = por %p122, %p123
      %p125 = scmp.ne.s32.totalorder %s113, %s114
      %p126 = scmp.eq.s32.totalorder %s20, 1
      %p127 = por %p125, %p126
      %p129 = scmp.ne.s32.totalorder %s114, %s128
      %p130 = scmp.eq.s32.totalorder %s20, 0
      %p131 = por %p129, %p130
      %s132 = ssub.s32 %s14, %s21
      %p133 = scmp.eq.s32.totalorder %s132, 0
      %s135 = sadd.s32 %s134, 1
      %s136 = scalar_select %p133, %s134, %s135
      %p139 = pneg %p133
      %p140 = scmp.eq.s32.totalorder %s14, 1
      %p141 = por %p139, %p140
      %p142 = scmp.ne.s32.totalorder %s134, %s137
      %p143 = scmp.eq.s32.totalorder %s14, 0
      %p144 = por %p142, %p143
      %p145 = scmp.ne.s32.totalorder %s134, %s137
      %p146 = scmp.eq.s32.totalorder %s19, 1
      %p147 = por %p145, %p146
      %p148 = scmp.ne.s32.totalorder %s137, %s138
      %p149 = scmp.eq.s32.totalorder %s19, 0
      %p150 = por %p148, %p149
      %p151 = scmp.ne.s32.totalorder %s137, %s138
      %p152 = scmp.eq.s32.totalorder %s20, 1
      %p153 = por %p151, %p152
      %p155 = scmp.ne.s32.totalorder %s138, %s154
      %p156 = scmp.eq.s32.totalorder %s20, 0
      %p157 = por %p155, %p156
      %p158 = scmp.le.s32.totalorder 1, %s14
      %p159 = scmp.lt.s32.totalorder %s14, 3
      %p160 = pnand %p158, %p159
      %p161 = pneg %p160
      // Predicated region
      $region9: #{tpu_custom_call.1} parent=5 // pred_check
        _
      $region10: #{tpu_custom_call.1} parent=5 // pred_check_branch
        %163 = sbr.rel (%p160) target = $region12
      $region11: #{tpu_custom_call.1} parent=5 // pred_region
        %s164 = ssub.s32 %s14, 1
        // Predicated region
        $region13: #{tpu_custom_call.1} parent=11 // pred_check
          %p165 = pneg %p61
        $region14: #{tpu_custom_call.1} parent=11 // pred_check_branch
          %167 = sbr.rel (%p165) target = $region16
        $region15: #{tpu_custom_call.1} parent=11 // pred_region
          _
        $region16: #{tpu_custom_call.1} parent=11 // pred_fallthru
          _
        // Predicated region
        $region17: #{tpu_custom_call.1} parent=11 // pred_check
          %p168 = pneg %p82
        $region18: #{tpu_custom_call.1} parent=11 // pred_check_branch
          %170 = sbr.rel (%p168) target = $region20
        $region19: #{tpu_custom_call.1} parent=11 // pred_region
          _
        $region20: #{tpu_custom_call.1} parent=11 // pred_fallthru
          _
        // Predicated region
        $region21: #{tpu_custom_call.1} parent=11 // pred_check
          %p171 = pneg %p103
        $region22: #{tpu_custom_call.1} parent=11 // pred_check_branch
          %173 = sbr.rel (%p171) target = $region24
        $region23: #{tpu_custom_call.1} parent=11 // pred_region
          _
        $region24: #{tpu_custom_call.1} parent=11 // pred_fallthru
          _
        // Predicated region
        $region25: #{tpu_custom_call.1} parent=11 // pred_check
          %p174 = pneg %p124
        $region26: #{tpu_custom_call.1} parent=11 // pred_check_branch
          %176 = sbr.rel (%p174) target = $region28
        $region27: #{tpu_custom_call.1} parent=11 // pred_region
          _
        $region28: #{tpu_custom_call.1} parent=11 // pred_fallthru
          _
      $region12: #{tpu_custom_call.1} parent=5 // pred_fallthru
        _
      %p177 = scmp.lt.s32.totalorder %s14, 2
      // Predicated region
      $region29: #{tpu_custom_call.1} parent=5 // pred_check
        %p178 = pneg %p177
      $region30: #{tpu_custom_call.1} parent=5 // pred_check_branch
        %180 = sbr.rel (%p178) target = $region32
      $region31: #{tpu_custom_call.1} parent=5 // pred_region
        // Predicated region
        $region33: #{tpu_custom_call.1} parent=31 // pred_check
          %p181 = pneg %p34
        $region34: #{tpu_custom_call.1} parent=31 // pred_check_branch
          %183 = sbr.rel (%p181) target = $region36
        $region35: #{tpu_custom_call.1} parent=31 // pred_region
          %p184 = scmp.lt.s32.totalorder %s14, 1
          %s185 = scalar_select %p184, %s14, 1
          %s186 = smul.addr %s185, 2
          %s187 = smul.addr %s186, 8
          %s188 = scalar_lea.vmem %s0, %s187
        $region36: #{tpu_custom_call.1} parent=31 // pred_fallthru
          _
      $region32: #{tpu_custom_call.1} parent=5 // pred_fallthru
        _
      %p189 = scmp.le.s32.totalorder 1, %s14
      %p190 = scmp.lt.s32.totalorder %s14, 3
      %p191 = pnand %p189, %p190
      %p192 = pneg %p191
      // Predicated region
      $region37: #{tpu_custom_call.1} parent=5 // pred_check
        _
      $region38: #{tpu_custom_call.1} parent=5 // pred_check_branch
        %194 = sbr.rel (%p191) target = $region40
      $region39: #{tpu_custom_call.1} parent=5 // pred_region
        %s195 = ssub.s32 %s14, 1
        %p196 = scmp.lt.s32.totalorder %s19, 1
        %s197 = scalar_select %p196, %s19, 1
        %s198 = smul.addr %s197, 2
        %s199 = smul.addr %s198, 8
        %s200 = scalar_lea.vmem %s0, %s199
        %p201 = pneg %p40
        %p202 = pneg %p37
        %p203 = pneg %p61
        %p204 = pneg %p58
        %p205 = pneg %p82
        %p206 = pneg %p79
        %p207 = pneg %p103
        %p208 = pneg %p100
        %p209 = pneg %p124
        %p210 = pneg %p121
        %p211 = pneg %p150
        %p212 = pneg %p147
        %s213 = sand.u32 %s137, 1
        %s214 = scalar_lea.sflag [#allocation3], %s213
        %s215 = sand.u32 %s137, 1
        %s216 = smul.addr %s215, 16
        %s217 = scalar_lea.vmem [#allocation2], %s216
        %p218 = scmp.lt.s32.totalorder %s19, 1
        %s219 = scalar_select %p218, %s19, 1
        %s220 = smul.addr %s219, 2
        %s221 = smul.addr %s220, 8
        %s222 = scalar_lea.vmem %s0, %s221
        %v224 = vld [vmem:[%s222] sm:$0xff]
        %v225 = vld [vmem:[%s222 + $0x8] sm:$0xff]
        %v226 = vpack.c.bf16 %v225, %v224
        %v227 = vld [vmem:[%s1] sm:$0xff]
        %v228 = vld [vmem:[%s1 + $0x8] sm:$0xf]
        %v229 = vld [vmem:[%s1 + $0xc] sm:$0xff]
        %v230 = vld [vmem:[%s1 + $0x14] sm:$0xf]
        %v231 = vld [vmem:[%s1 + $0x18] sm:$0xff]
        %v232 = vld [vmem:[%s1 + $0x20] sm:$0xf]
        %v233 = vld [vmem:[%s1 + $0x24] sm:$0xff]
        %v234 = vld [vmem:[%s1 + $0x2c] sm:$0xf]
        %v235 = vld [vmem:[%s2] sm:$0x7]
        %v237 = vlaneseq
        %v238 = vshrl.u32 %v237, 7
        %v239 = vsub.s32 0, %v238
        %v240 = vrot.slane %v235, %v239
        %v241 = vlaneseq
        %v242 = vshrl.u32 %v241, 7
        %v243 = vsub.s32 1, %v242
        %v244 = vrot.slane %v235, %v243
        %v245 = vlaneseq
        %v246 = vshrl.u32 %v245, 7
        %v247 = vsub.s32 2, %v246
        %v248 = vrot.slane %v235, %v247
        %v260 = vunpack.c.l.b16 %v227
        %v261 = vunpack.c.h.b16 %v227
        %v262 = vunpack.c.l.b16 %v228
        %v263 = vunpack.c.l.b16 %v229
        %v264 = vunpack.c.h.b16 %v229
        %v265 = vunpack.c.l.b16 %v230
        %v266 = vunpack.c.l.b16 %v231
        %v267 = vunpack.c.h.b16 %v231
        %v268 = vunpack.c.l.b16 %v232
        %v269 = vunpack.c.l.b16 %v233
        %v270 = vunpack.c.h.b16 %v233
        %v271 = vunpack.c.l.b16 %v234
        %v272 = vpack.c.b16 %v263, %v260
        %v273 = vpack.c.b16 %v264, %v261
        %v274 = vpack.c.b16 %v265, %v262
        %v275 = vpack.c.b16 %v269, %v266
        %v276 = vpack.c.b16 %v270, %v267
        %v277 = vpack.c.b16 %v271, %v268
        %vm284 = vcmask 261120
        %v286 = vsel %vm284, %v226, 0
        %288 = vmatprep.subr.bf16.mxu0 %v273
        %289 = vmatpush1.bf16.msra.mxu0 %v272
        %290 = vmatprep.subr.bf16.mxu0 %v276
        %291 = vmatpush1.bf16.msra.mxu0 %v275
        %292 = vmatprep.subr.bf16.mxu0 0
        %293 = vmatpush1.bf16.msra.mxu0 0
        %294 = vmatprep.subr.bf16.mxu0 0
        %295 = vmatpush1.bf16.msra.mxu0 0
        %296 = vmatprep.subr.bf16.mxu0 0
        %297 = vmatpush1.bf16.msra.mxu0 0
        %298 = vmatprep.subr.bf16.mxu0 0
        %299 = vmatpush1.bf16.msra.mxu0 0
        %300 = vmatprep.subr.bf16.mxu0 0
        %301 = vmatpush1.bf16.msra.mxu0 0
        %302 = vmatprep.subr.bf16.mxu0 0
        %303 = vmatpush1.bf16.msra.mxu0 0
        %304 = vmatprep.subr.bf16.mxu0 0
        %305 = vmatpush1.bf16.msra.mxu0 0
        %306 = vmatprep.subr.bf16.mxu0 0
        %307 = vmatpush1.bf16.msra.mxu0 0
        %308 = vmatprep.subr.bf16.mxu0 0
        %309 = vmatpush1.bf16.msra.mxu0 0
        %310 = vmatprep.subr.bf16.mxu0 0
        %311 = vmatpush1.bf16.msra.mxu0 0
        %312 = vmatprep.subr.bf16.mxu0 0
        %313 = vmatpush1.bf16.msra.mxu0 0
        %314 = vmatprep.subr.bf16.mxu0 0
        %315 = vmatpush1.bf16.msra.mxu0 0
        %316 = vmatprep.subr.bf16.mxu0 0
        %317 = vmatpush1.bf16.msra.mxu0 0
        %318 = vmatprep.subr.bf16.mxu0 0
        %319 = vmatpush1.bf16.msra.mxu0 0
        %320 = vmatprep.mubr.bf16.mxu0 0
        %321 = vmatmul.mubr.bf16.gmra.mrb[0].mxu0 %v286
        %v322 = vpop.f32.mrb[0].mxu0
        %v323 = vadd.f32 %v240, %v322
        %v324 = vpop.f32.mrb[0].mxu0
        %v325 = vadd.f32 %v244, %v324
        %v326 = vpop.f32.mrb[0].mxu0
        %v327 = vadd.f32 %v240, %v326
        %v328 = vpop.f32.mrb[0].mxu0
        %v329 = vadd.f32 %v244, %v328
        %330 = vdwg.mxu0
        %331 = vmatprep.subr.bf16.mxu0 0
        %332 = vmatpush1.bf16.msra.mxu0 %v274
        %333 = vmatprep.subr.bf16.mxu0 0
        %334 = vmatpush1.bf16.msra.mxu0 %v277
        %335 = vmatprep.subr.bf16.mxu0 0
        %336 = vmatpush1.bf16.msra.mxu0 0
        %337 = vmatprep.subr.bf16.mxu0 0
        %338 = vmatpush1.bf16.msra.mxu0 0
        %339 = vmatprep.subr.bf16.mxu0 0
        %340 = vmatpush1.bf16.msra.mxu0 0
        %341 = vmatprep.subr.bf16.mxu0 0
        %342 = vmatpush1.bf16.msra.mxu0 0
        %343 = vmatprep.subr.bf16.mxu0 0
        %344 = vmatpush1.bf16.msra.mxu0 0
        %345 = vmatprep.subr.bf16.mxu0 0
        %346 = vmatpush1.bf16.msra.mxu0 0
        %347 = vmatprep.subr.bf16.mxu0 0
        %348 = vmatpush1.bf16.msra.mxu0 0
        %349 = vmatprep.subr.bf16.mxu0 0
        %350 = vmatpush1.bf16.msra.mxu0 0
        %351 = vmatprep.subr.bf16.mxu0 0
        %352 = vmatpush1.bf16.msra.mxu0 0
        %353 = vmatprep.subr.bf16.mxu0 0
        %354 = vmatpush1.bf16.msra.mxu0 0
        %355 = vmatprep.subr.bf16.mxu0 0
        %356 = vmatpush1.bf16.msra.mxu0 0
        %357 = vmatprep.subr.bf16.mxu0 0
        %358 = vmatpush1.bf16.msra.mxu0 0
        %359 = vmatprep.subr.bf16.mxu0 0
        %360 = vmatpush1.bf16.msra.mxu0 0
        %361 = vmatprep.subr.bf16.mxu0 0
        %362 = vmatpush1.bf16.msra.mxu0 0
        %363 = vmatprep.mubr.bf16.mxu0 0
        %364 = vmatmul.mubr.bf16.gmra.mrb[0].mxu0 %v286
        %v365 = vpop.f32.mrb[0].mxu0
        %v366 = vadd.f32 %v248, %v365
        %v367 = vpop.f32.mrb[0].mxu0
        %v368 = vpop.f32.mrb[0].mxu0
        %v369 = vadd.f32 %v248, %v368
        %v370 = vpop.f32.mrb[0].mxu0
        %371 = vdwg.mxu0
        %v372 = vpack.c.bf16 %v327, %v323
        %v373 = vpack.c.bf16 %v329, %v325
        %v375 = vsel %vm284, %v372, 0
        %v378 = vsel %vm284, %v373, 0
        %380 = vmatprep.subr.bf16.mxu0 0
        %381 = vmatpush1.bf16.xpose.msra.mxu0 %v378
        %382 = vmatprep.subr.bf16.mxu0 0
        %383 = vmatpush1.bf16.xpose.msra.mxu0 0
        %384 = vmatprep.subr.bf16.mxu0 0
        %385 = vmatpush1.bf16.xpose.msra.mxu0 0
        %386 = vmatprep.subr.bf16.mxu0 0
        %387 = vmatpush1.bf16.xpose.msra.mxu0 0
        %388 = vmatprep.subr.bf16.mxu0 0
        %389 = vmatpush1.bf16.xpose.msra.mxu0 0
        %390 = vmatprep.subr.bf16.mxu0 0
        %391 = vmatpush1.bf16.xpose.msra.mxu0 0
        %392 = vmatprep.subr.bf16.mxu0 0
        %393 = vmatpush1.bf16.xpose.msra.mxu0 0
        %394 = vmatprep.subr.bf16.mxu0 0
        %395 = vmatpush1.bf16.xpose.msra.mxu0 0
        %396 = vmatprep.subr.bf16.mxu0 0
        %397 = vmatpush1.bf16.xpose.msra.mxu0 0
        %398 = vmatprep.subr.bf16.mxu0 0
        %399 = vmatpush1.bf16.xpose.msra.mxu0 0
        %400 = vmatprep.subr.bf16.mxu0 0
        %401 = vmatpush1.bf16.xpose.msra.mxu0 0
        %402 = vmatprep.subr.bf16.mxu0 0
        %403 = vmatpush1.bf16.xpose.msra.mxu0 0
        %404 = vmatprep.subr.bf16.mxu0 0
        %405 = vmatpush1.bf16.xpose.msra.mxu0 0
        %406 = vmatprep.subr.bf16.mxu0 0
        %407 = vmatpush1.bf16.xpose.msra.mxu0 0
        %408 = vmatprep.subr.bf16.mxu0 0
        %409 = vmatpush1.bf16.xpose.msra.mxu0 0
        %410 = vmatprep.subr.bf16.mxu0 0
        %411 = vmatpush1.bf16.xpose.msra.mxu0 0
        %412 = vmatprep.mubr.bf16.mxu0 0
        %413 = vmatmul.mubr.bf16.gmra.mrb[0].mxu0 %v375
        %v414 = vpop.f32.mrb[0].mxu0
        %v415 = vadd.f32 0.0, %v414
        %v416 = vpop.f32.mrb[0].mxu0
        %v417 = vpop.f32.mrb[0].mxu0
        %v418 = vadd.f32 0.0, %v417
        %v419 = vpop.f32.mrb[0].mxu0
        %420 = vdwg.mxu0
        %vm421 = vcmask 130048
        %v422 = vsel %vm421, %v415, -inf
        %423 = vmax.xlane.f32.xlu0 %v422
        %v424 = vpop.xlane.xlu0 %423
        %v425 = vsel %vm421, %v418, -inf
        %426 = vmax.xlane.f32.xlu0 %v425
        %v427 = vpop.xlane.xlu0 %426
        %v428 = vsub.f32 %v415, %v424
        %v429 = vsub.f32 %v418, %v427
        %v430 = vmul.f32 %v428, 1.442695
        %v431 = vpow.pop %v430
        %v432 = vmul.f32 %v429, 1.442695
        %v433 = vpow.pop %v432
        %v434 = vsel %vm421, %v431, 0.0
        %435 = vadd.xlane.f32.xlu0 %v434
        %v436 = vpop.xlane.xlu0 %435
        %v437 = vsel %vm421, %v433, 0.0
        %438 = vadd.xlane.f32.xlu0 %v437
        %v439 = vpop.xlane.xlu0 %438
        %v440 = vrcp.pop %v436
        %v441 = vrcp.pop %v439
        %v442 = vmul.f32 %v431, %v440
        %v443 = vmul.f32 %v433, %v441
        %v444 = vpack.c.bf16 %v443, %v442
        %v445 = vpack.c.bf16 %v369, %v366
        %v447 = vsel %vm421, %v444, 0
        %449 = vmatprep.subr.bf16.mxu0 0
        %450 = vmatpush1.bf16.msra.mxu0 %v445
        %451 = vmatprep.subr.bf16.mxu0 0
        %452 = vmatpush1.bf16.msra.mxu0 0
        %453 = vmatprep.subr.bf16.mxu0 0
        %454 = vmatpush1.bf16.msra.mxu0 0
        %455 = vmatprep.subr.bf16.mxu0 0
        %456 = vmatpush1.bf16.msra.mxu0 0
        %457 = vmatprep.subr.bf16.mxu0 0
        %458 = vmatpush1.bf16.msra.mxu0 0
        %459 = vmatprep.subr.bf16.mxu0 0
        %460 = vmatpush1.bf16.msra.mxu0 0
        %461 = vmatprep.subr.bf16.mxu0 0
        %462 = vmatpush1.bf16.msra.mxu0 0
        %463 = vmatprep.subr.bf16.mxu0 0
        %464 = vmatpush1.bf16.msra.mxu0 0
        %465 = vmatprep.subr.bf16.mxu0 0
        %466 = vmatpush1.bf16.msra.mxu0 0
        %467 = vmatprep.subr.bf16.mxu0 0
        %468 = vmatpush1.bf16.msra.mxu0 0
        %469 = vmatprep.subr.bf16.mxu0 0
        %470 = vmatpush1.bf16.msra.mxu0 0
        %471 = vmatprep.subr.bf16.mxu0 0
        %472 = vmatpush1.bf16.msra.mxu0 0
        %473 = vmatprep.subr.bf16.mxu0 0
        %474 = vmatpush1.bf16.msra.mxu0 0
        %475 = vmatprep.subr.bf16.mxu0 0
        %476 = vmatpush1.bf16.msra.mxu0 0
        %477 = vmatprep.subr.bf16.mxu0 0
        %478 = vmatpush1.bf16.msra.mxu0 0
        %479 = vmatprep.subr.bf16.mxu0 0
        %480 = vmatpush1.bf16.msra.mxu0 0
        %481 = vmatprep.mubr.bf16.mxu0 0
        %482 = vmatmul.mubr.bf16.gmra.mrb[0].mxu0 %v447
        %v483 = vpop.f32.mrb[0].mxu0
        %v484 = vadd.f32 0.0, %v483
        %v485 = vpop.f32.mrb[0].mxu0
        %v486 = vpop.f32.mrb[0].mxu0
        %v487 = vadd.f32 0.0, %v486
        %v488 = vpop.f32.mrb[0].mxu0
        %489 = vdwg.mxu0
        %491 = vrot.lane.b32.xlu0 %v372, 96
        %v492 = vpop.permute.xlu0 %491
        %494 = vrot.lane.b32.xlu0 %v373, 96
        %v495 = vpop.permute.xlu0 %494
        %v497 = vsel %vm284, %v492, 0
        %v500 = vsel %vm284, %v495, 0
        %502 = vmatprep.subr.bf16.mxu0 0
        %503 = vmatpush1.bf16.xpose.msra.mxu0 %v500
        %504 = vmatprep.subr.bf16.mxu0 0
        %505 = vmatpush1.bf16.xpose.msra.mxu0 0
        %506 = vmatprep.subr.bf16.mxu0 0
        %507 = vmatpush1.bf16.xpose.msra.mxu0 0
        %508 = vmatprep.subr.bf16.mxu0 0
        %509 = vmatpush1.bf16.xpose.msra.mxu0 0
        %510 = vmatprep.subr.bf16.mxu0 0
        %511 = vmatpush1.bf16.xpose.msra.mxu0 0
        %512 = vmatprep.subr.bf16.mxu0 0
        %513 = vmatpush1.bf16.xpose.msra.mxu0 0
        %514 = vmatprep.subr.bf16.mxu0 0
        %515 = vmatpush1.bf16.xpose.msra.mxu0 0
        %516 = vmatprep.subr.bf16.mxu0 0
        %517 = vmatpush1.bf16.xpose.msra.mxu0 0
        %518 = vmatprep.subr.bf16.mxu0 0
        %519 = vmatpush1.bf16.xpose.msra.mxu0 0
        %520 = vmatprep.subr.bf16.mxu0 0
        %521 = vmatpush1.bf16.xpose.msra.mxu0 0
        %522 = vmatprep.subr.bf16.mxu0 0
        %523 = vmatpush1.bf16.xpose.msra.mxu0 0
        %524 = vmatprep.subr.bf16.mxu0 0
        %525 = vmatpush1.bf16.xpose.msra.mxu0 0
        %526 = vmatprep.subr.bf16.mxu0 0
        %527 = vmatpush1.bf16.xpose.msra.mxu0 0
        %528 = vmatprep.subr.bf16.mxu0 0
        %529 = vmatpush1.bf16.xpose.msra.mxu0 0
        %530 = vmatprep.subr.bf16.mxu0 0
        %531 = vmatpush1.bf16.xpose.msra.mxu0 0
        %532 = vmatprep.subr.bf16.mxu0 0
        %533 = vmatpush1.bf16.xpose.msra.mxu0 0
        %534 = vmatprep.mubr.bf16.mxu0 0
        %535 = vmatmul.mubr.bf16.gmra.mrb[0].mxu0 %v497
        %v536 = vpop.f32.mrb[0].mxu0
        %v537 = vadd.f32 0.0, %v536
        %v538 = vpop.f32.mrb[0].mxu0
        %v539 = vpop.f32.mrb[0].mxu0
        %v540 = vadd.f32 0.0, %v539
        %v541 = vpop.f32.mrb[0].mxu0
        %542 = vdwg.mxu0
        %v543 = vsel %vm421, %v537, -inf
        %544 = vmax.xlane.f32.xlu0 %v543
        %v545 = vpop.xlane.xlu0 %544
        %v546 = vsel %vm421, %v540, -inf
        %547 = vmax.xlane.f32.xlu0 %v546
        %v548 = vpop.xlane.xlu0 %547
        %v549 = vsub.f32 %v537, %v545
        %v550 = vsub.f32 %v540, %v548
        %v551 = vmul.f32 %v549, 1.442695
        %v552 = vpow.pop %v551
        %v553 = vmul.f32 %v550, 1.442695
        %v554 = vpow.pop %v553
        %v555 = vsel %vm421, %v552, 0.0
        %556 = vadd.xlane.f32.xlu0 %v555
        %v557 = vpop.xlane.xlu0 %556
        %v558 = vsel %vm421, %v554, 0.0
        %559 = vadd.xlane.f32.xlu0 %v558
        %v560 = vpop.xlane.xlu0 %559
        %v561 = vrcp.pop %v557
        %v562 = vrcp.pop %v560
        %v563 = vmul.f32 %v552, %v561
        %v564 = vmul.f32 %v554, %v562
        %v565 = vpack.c.bf16 %v564, %v563
        %567 = vrot.lane.b32.xlu0 %v445, 96
        %v568 = vpop.permute.xlu0 %567
        %v571 = vsel %vm421, %v565, 0
        %573 = vmatprep.subr.bf16.mxu0 0
        %574 = vmatpush1.bf16.msra.mxu0 %v568
        %575 = vmatprep.subr.bf16.mxu0 0
        %576 = vmatpush1.bf16.msra.mxu0 0
        %577 = vmatprep.subr.bf16.mxu0 0
        %578 = vmatpush1.bf16.msra.mxu0 0
        %579 = vmatprep.subr.bf16.mxu0 0
        %580 = vmatpush1.bf16.msra.mxu0 0
        %581 = vmatprep.subr.bf16.mxu0 0
        %582 = vmatpush1.bf16.msra.mxu0 0
        %583 = vmatprep.subr.bf16.mxu0 0
        %584 = vmatpush1.bf16.msra.mxu0 0
        %585 = vmatprep.subr.bf16.mxu0 0
        %586 = vmatpush1.bf16.msra.mxu0 0
        %587 = vmatprep.subr.bf16.mxu0 0
        %588 = vmatpush1.bf16.msra.mxu0 0
        %589 = vmatprep.subr.bf16.mxu0 0
        %590 = vmatpush1.bf16.msra.mxu0 0
        %591 = vmatprep.subr.bf16.mxu0 0
        %592 = vmatpush1.bf16.msra.mxu0 0
        %593 = vmatprep.subr.bf16.mxu0 0
        %594 = vmatpush1.bf16.msra.mxu0 0
        %595 = vmatprep.subr.bf16.mxu0 0
        %596 = vmatpush1.bf16.msra.mxu0 0
        %597 = vmatprep.subr.bf16.mxu0 0
        %598 = vmatpush1.bf16.msra.mxu0 0
        %599 = vmatprep.subr.bf16.mxu0 0
        %600 = vmatpush1.bf16.msra.mxu0 0
        %601 = vmatprep.subr.bf16.mxu0 0
        %602 = vmatpush1.bf16.msra.mxu0 0
        %603 = vmatprep.subr.bf16.mxu0 0
        %604 = vmatpush1.bf16.msra.mxu0 0
        %605 = vmatprep.mubr.bf16.mxu0 0
        %606 = vmatmul.mubr.bf16.gmra.mrb[0].mxu0 %v571
        %v607 = vpop.f32.mrb[0].mxu0
        %v608 = vadd.f32 0.0, %v607
        %v609 = vpop.f32.mrb[0].mxu0
        %v610 = vpop.f32.mrb[0].mxu0
        %v611 = vadd.f32 0.0, %v610
        %v612 = vpop.f32.mrb[0].mxu0
        %613 = vdwg.mxu0
        %614 = vrot.lane.b32.xlu0 %v372, 64
        %v615 = vpop.permute.xlu0 %614
        %616 = vrot.lane.b32.xlu0 %v373, 64
        %v617 = vpop.permute.xlu0 %616
        %v619 = vsel %vm284, %v615, 0
        %v622 = vsel %vm284, %v617, 0
        %624 = vmatprep.subr.bf16.mxu0 0
        %625 = vmatpush1.bf16.xpose.msra.mxu0 %v622
        %626 = vmatprep.subr.bf16.mxu0 0
        %627 = vmatpush1.bf16.xpose.msra.mxu0 0
        %628 = vmatprep.subr.bf16.mxu0 0
        %629 = vmatpush1.bf16.xpose.msra.mxu0 0
        %630 = vmatprep.subr.bf16.mxu0 0
        %631 = vmatpush1.bf16.xpose.msra.mxu0 0
        %632 = vmatprep.subr.bf16.mxu0 0
        %633 = vmatpush1.bf16.xpose.msra.mxu0 0
        %634 = vmatprep.subr.bf16.mxu0 0
        %635 = vmatpush1.bf16.xpose.msra.mxu0 0
        %636 = vmatprep.subr.bf16.mxu0 0
        %637 = vmatpush1.bf16.xpose.msra.mxu0 0
        %638 = vmatprep.subr.bf16.mxu0 0
        %639 = vmatpush1.bf16.xpose.msra.mxu0 0
        %640 = vmatprep.subr.bf16.mxu0 0
        %641 = vmatpush1.bf16.xpose.msra.mxu0 0
        %642 = vmatprep.subr.bf16.mxu0 0
        %643 = vmatpush1.bf16.xpose.msra.mxu0 0
        %644 = vmatprep.subr.bf16.mxu0 0
        %645 = vmatpush1.bf16.xpose.msra.mxu0 0
        %646 = vmatprep.subr.bf16.mxu0 0
        %647 = vmatpush1.bf16.xpose.msra.mxu0 0
        %648 = vmatprep.subr.bf16.mxu0 0
        %649 = vmatpush1.bf16.xpose.msra.mxu0 0
        %650 = vmatprep.subr.bf16.mxu0 0
        %651 = vmatpush1.bf16.xpose.msra.mxu0 0
        %652 = vmatprep.subr.bf16.mxu0 0
        %653 = vmatpush1.bf16.xpose.msra.mxu0 0
        %654 = vmatprep.subr.bf16.mxu0 0
        %655 = vmatpush1.bf16.xpose.msra.mxu0 0
        %656 = vmatprep.mubr.bf16.mxu0 0
        %657 = vmatmul.mubr.bf16.gmra.mrb[0].mxu0 %v619
        %v658 = vpop.f32.mrb[0].mxu0
        %v659 = vadd.f32 0.0, %v658
        %v660 = vpop.f32.mrb[0].mxu0
        %v661 = vpop.f32.mrb[0].mxu0
        %v662 = vadd.f32 0.0, %v661
        %v663 = vpop.f32.mrb[0].mxu0
        %664 = vdwg.mxu0
        %v665 = vsel %vm421, %v659, -inf
        %666 = vmax.xlane.f32.xlu0 %v665
        %v667 = vpop.xlane.xlu0 %666
        %v668 = vsel %vm421, %v662, -inf
        %669 = vmax.xlane.f32.xlu0 %v668
        %v670 = vpop.xlane.xlu0 %669
        %v671 = vsub.f32 %v659, %v667
        %v672 = vsub.f32 %v662, %v670
        %v673 = vmul.f32 %v671, 1.442695
        %v674 = vpow.pop %v673
        %v675 = vmul.f32 %v672, 1.442695
        %v676 = vpow.pop %v675
        %v677 = vsel %vm421, %v674, 0.0
        %678 = vadd.xlane.f32.xlu0 %v677
        %v679 = vpop.xlane.xlu0 %678
        %v680 = vsel %vm421, %v676, 0.0
        %681 = vadd.xlane.f32.xlu0 %v680
        %v682 = vpop.xlane.xlu0 %681
        %v683 = vrcp.pop %v679
        %v684 = vrcp.pop %v682
        %v685 = vmul.f32 %v674, %v683
        %v686 = vmul.f32 %v676, %v684
        %v687 = vpack.c.bf16 %v686, %v685
        %688 = vrot.lane.b32.xlu0 %v445, 64
        %v689 = vpop.permute.xlu0 %688
        %v692 = vsel %vm421, %v687, 0
        %694 = vmatprep.subr.bf16.mxu0 0
        %695 = vmatpush1.bf16.msra.mxu0 %v689
        %696 = vmatprep.subr.bf16.mxu0 0
        %697 = vmatpush1.bf16.msra.mxu0 0
        %698 = vmatprep.subr.bf16.mxu0 0
        %699 = vmatpush1.bf16.msra.mxu0 0
        %700 = vmatprep.subr.bf16.mxu0 0
        %701 = vmatpush1.bf16.msra.mxu0 0
        %702 = vmatprep.subr.bf16.mxu0 0
        %703 = vmatpush1.bf16.msra.mxu0 0
        %704 = vmatprep.subr.bf16.mxu0 0
        %705 = vmatpush1.bf16.msra.mxu0 0
        %706 = vmatprep.subr.bf16.mxu0 0
        %707 = vmatpush1.bf16.msra.mxu0 0
        %708 = vmatprep.subr.bf16.mxu0 0
        %709 = vmatpush1.bf16.msra.mxu0 0
        %710 = vmatprep.subr.bf16.mxu0 0
        %711 = vmatpush1.bf16.msra.mxu0 0
        %712 = vmatprep.subr.bf16.mxu0 0
        %713 = vmatpush1.bf16.msra.mxu0 0
        %714 = vmatprep.subr.bf16.mxu0 0
        %715 = vmatpush1.bf16.msra.mxu0 0
        %716 = vmatprep.subr.bf16.mxu0 0
        %717 = vmatpush1.bf16.msra.mxu0 0
        %718 = vmatprep.subr.bf16.mxu0 0
        %719 = vmatpush1.bf16.msra.mxu0 0
        %720 = vmatprep.subr.bf16.mxu0 0
        %721 = vmatpush1.bf16.msra.mxu0 0
        %722 = vmatprep.subr.bf16.mxu0 0
        %723 = vmatpush1.bf16.msra.mxu0 0
        %724 = vmatprep.subr.bf16.mxu0 0
        %725 = vmatpush1.bf16.msra.mxu0 0
        %726 = vmatprep.mubr.bf16.mxu0 0
        %727 = vmatmul.mubr.bf16.gmra.mrb[0].mxu0 %v692
        %v728 = vpop.f32.mrb[0].mxu0
        %v729 = vadd.f32 0.0, %v728
        %v730 = vpop.f32.mrb[0].mxu0
        %v731 = vpop.f32.mrb[0].mxu0
        %v732 = vadd.f32 0.0, %v731
        %v733 = vpop.f32.mrb[0].mxu0
        %734 = vdwg.mxu0
        %735 = vrot.lane.b32.xlu0 %v372, 32
        %v736 = vpop.permute.xlu0 %735
        %737 = vrot.lane.b32.xlu0 %v373, 32
        %v738 = vpop.permute.xlu0 %737
        %v740 = vsel %vm284, %v736, 0
        %v743 = vsel %vm284, %v738, 0
        %745 = vmatprep.subr.bf16.mxu0 0
        %746 = vmatpush1.bf16.xpose.msra.mxu0 %v743
        %747 = vmatprep.subr.bf16.mxu0 0
        %748 = vmatpush1.bf16.xpose.msra.mxu0 0
        %749 = vmatprep.subr.bf16.mxu0 0
        %750 = vmatpush1.bf16.xpose.msra.mxu0 0
        %751 = vmatprep.subr.bf16.mxu0 0
        %752 = vmatpush1.bf16.xpose.msra.mxu0 0
        %753 = vmatprep.subr.bf16.mxu0 0
        %754 = vmatpush1.bf16.xpose.msra.mxu0 0
        %755 = vmatprep.subr.bf16.mxu0 0
        %756 = vmatpush1.bf16.xpose.msra.mxu0 0
        %757 = vmatprep.subr.bf16.mxu0 0
        %758 = vmatpush1.bf16.xpose.msra.mxu0 0
        %759 = vmatprep.subr.bf16.mxu0 0
        %760 = vmatpush1.bf16.xpose.msra.mxu0 0
        %761 = vmatprep.subr.bf16.mxu0 0
        %762 = vmatpush1.bf16.xpose.msra.mxu0 0
        %763 = vmatprep.subr.bf16.mxu0 0
        %764 = vmatpush1.bf16.xpose.msra.mxu0 0
        %765 = vmatprep.subr.bf16.mxu0 0
        %766 = vmatpush1.bf16.xpose.msra.mxu0 0
        %767 = vmatprep.subr.bf16.mxu0 0
        %768 = vmatpush1.bf16.xpose.msra.mxu0 0
        %769 = vmatprep.subr.bf16.mxu0 0
        %770 = vmatpush1.bf16.xpose.msra.mxu0 0
        %771 = vmatprep.subr.bf16.mxu0 0
        %772 = vmatpush1.bf16.xpose.msra.mxu0 0
        %773 = vmatprep.subr.bf16.mxu0 0
        %774 = vmatpush1.bf16.xpose.msra.mxu0 0
        %775 = vmatprep.subr.bf16.mxu0 0
        %776 = vmatpush1.bf16.xpose.msra.mxu0 0
        %777 = vmatprep.mubr.bf16.mxu0 0
        %778 = vmatmul.mubr.bf16.gmra.mrb[0].mxu0 %v740
        %v779 = vpop.f32.mrb[0].mxu0
        %v780 = vadd.f32 0.0, %v779
        %v781 = vpop.f32.mrb[0].mxu0
        %v782 = vpop.f32.mrb[0].mxu0
        %v783 = vadd.f32 0.0, %v782
        %v784 = vpop.f32.mrb[0].mxu0
        %785 = vdwg.mxu0
        %v786 = vsel %vm421, %v780, -inf
        %787 = vmax.xlane.f32.xlu0 %v786
        %v788 = vpop.xlane.xlu0 %787
        %v789 = vsel %vm421, %v783, -inf
        %790 = vmax.xlane.f32.xlu0 %v789
        %v791 = vpop.xlane.xlu0 %790
        %v792 = vsub.f32 %v780, %v788
        %v793 = vsub.f32 %v783, %v791
        %v794 = vmul.f32 %v792, 1.442695
        %v795 = vpow.pop %v794
        %v796 = vmul.f32 %v793, 1.442695
        %v797 = vpow.pop %v796
        %v798 = vsel %vm421, %v795, 0.0
        %799 = vadd.xlane.f32.xlu0 %v798
        %v800 = vpop.xlane.xlu0 %799
        %v801 = vsel %vm421, %v797, 0.0
        %802 = vadd.xlane.f32.xlu0 %v801
        %v803 = vpop.xlane.xlu0 %802
        %v804 = vrcp.pop %v800
        %v805 = vrcp.pop %v803
        %v806 = vmul.f32 %v795, %v804
        %v807 = vmul.f32 %v797, %v805
        %v808 = vpack.c.bf16 %v807, %v806
        %809 = vrot.lane.b32.xlu0 %v445, 32
        %v810 = vpop.permute.xlu0 %809
        %v813 = vsel %vm421, %v808, 0
        %815 = vmatprep.subr.bf16.mxu0 0
        %816 = vmatpush1.bf16.msra.mxu0 %v810
        %817 = vmatprep.subr.bf16.mxu0 0
        %818 = vmatpush1.bf16.msra.mxu0 0
        %819 = vmatprep.subr.bf16.mxu0 0
        %820 = vmatpush1.bf16.msra.mxu0 0
        %821 = vmatprep.subr.bf16.mxu0 0
        %822 = vmatpush1.bf16.msra.mxu0 0
        %823 = vmatprep.subr.bf16.mxu0 0
        %824 = vmatpush1.bf16.msra.mxu0 0
        %825 = vmatprep.subr.bf16.mxu0 0
        %826 = vmatpush1.bf16.msra.mxu0 0
        %827 = vmatprep.subr.bf16.mxu0 0
        %828 = vmatpush1.bf16.msra.mxu0 0
        %829 = vmatprep.subr.bf16.mxu0 0
        %830 = vmatpush1.bf16.msra.mxu0 0
        %831 = vmatprep.subr.bf16.mxu0 0
        %832 = vmatpush1.bf16.msra.mxu0 0
        %833 = vmatprep.subr.bf16.mxu0 0
        %834 = vmatpush1.bf16.msra.mxu0 0
        %835 = vmatprep.subr.bf16.mxu0 0
        %836 = vmatpush1.bf16.msra.mxu0 0
        %837 = vmatprep.subr.bf16.mxu0 0
        %838 = vmatpush1.bf16.msra.mxu0 0
        %839 = vmatprep.subr.bf16.mxu0 0
        %840 = vmatpush1.bf16.msra.mxu0 0
        %841 = vmatprep.subr.bf16.mxu0 0
        %842 = vmatpush1.bf16.msra.mxu0 0
        %843 = vmatprep.subr.bf16.mxu0 0
        %844 = vmatpush1.bf16.msra.mxu0 0
        %845 = vmatprep.subr.bf16.mxu0 0
        %846 = vmatpush1.bf16.msra.mxu0 0
        %847 = vmatprep.mubr.bf16.mxu0 0
        %848 = vmatmul.mubr.bf16.gmra.mrb[0].mxu0 %v813
        %v849 = vpop.f32.mrb[0].mxu0
        %v850 = vadd.f32 0.0, %v849
        %v851 = vpop.f32.mrb[0].mxu0
        %v852 = vpop.f32.mrb[0].mxu0
        %v853 = vadd.f32 0.0, %v852
        %v854 = vpop.f32.mrb[0].mxu0
        %855 = vdwg.mxu0
        %858 = vrot.lane.b32.xlu0 %v608, 32
        %v859 = vpop.permute.xlu0 %858
        %860 = vrot.lane.b32.xlu0 %v611, 32
        %v861 = vpop.permute.xlu0 %860
        %866 = vrot.lane.b32.xlu0 %v729, 64
        %v867 = vpop.permute.xlu0 %866
        %868 = vrot.lane.b32.xlu0 %v732, 64
        %v869 = vpop.permute.xlu0 %868
        %874 = vrot.lane.b32.xlu0 %v850, 96
        %v875 = vpop.permute.xlu0 %874
        %876 = vrot.lane.b32.xlu0 %v853, 96
        %v877 = vpop.permute.xlu0 %876
        %v880 = vsel %vm284, %v484, %v859
        %v881 = vsel %vm284, %v487, %v861
        %vm882 = vcmask 523264
        %v883 = vsel %vm882, %v880, %v867
        %v884 = vsel %vm882, %v881, %v869
        %vm885 = vcmask 785408
        %v886 = vsel %vm885, %v883, %v875
        %v887 = vsel %vm885, %v884, %v877
        %v888 = vpack.c.bf16 %v887, %v886
        %v889 = vld [vmem:[%s3] sm:$0xf]
        %v890 = vld [vmem:[%s3 + $0x4] sm:$0xf]
        %v891 = vld [vmem:[%s3 + $0x8] sm:$0xf]
        %v892 = vld [vmem:[%s3 + $0xc] sm:$0xf]
        %v893 = vld [vmem:[%s3 + $0x10] sm:$0xf]
        %v894 = vld [vmem:[%s3 + $0x14] sm:$0xf]
        %v895 = vld [vmem:[%s3 + $0x18] sm:$0xf]
        %v896 = vld [vmem:[%s3 + $0x1c] sm:$0xf]
        %v897 = vld [vmem:[%s3 + $0x20] sm:$0xf]
        %v898 = vld [vmem:[%s3 + $0x24] sm:$0xf]
        %v899 = vld [vmem:[%s3 + $0x28] sm:$0xf]
        %v900 = vld [vmem:[%s3 + $0x2c] sm:$0xf]
        %v901 = vld [vmem:[%s3 + $0x30] sm:$0xf]
        %v902 = vld [vmem:[%s3 + $0x34] sm:$0xf]
        %v903 = vld [vmem:[%s3 + $0x38] sm:$0xf]
        %v904 = vld [vmem:[%s3 + $0x3c] sm:$0xf]
        %v905 = vld [vmem:[%s4] sm:$0x1]
        %v907 = vlaneseq
        %v908 = vshrl.u32 %v907, 7
        %v909 = vsub.s32 0, %v908
        %v910 = vrot.slane %v905, %v909
        %v928 = vunpack.c.l.b16 %v889
        %v929 = vunpack.c.l.b16 %v890
        %v930 = vunpack.c.l.b16 %v891
        %v931 = vunpack.c.l.b16 %v892
        %v932 = vunpack.c.l.b16 %v893
        %v933 = vunpack.c.l.b16 %v894
        %v934 = vunpack.c.l.b16 %v895
        %v935 = vunpack.c.l.b16 %v896
        %v936 = vunpack.c.l.b16 %v897
        %v937 = vunpack.c.l.b16 %v898
        %v938 = vunpack.c.l.b16 %v899
        %v939 = vunpack.c.l.b16 %v900
        %v940 = vunpack.c.l.b16 %v901
        %v941 = vunpack.c.l.b16 %v902
        %v942 = vunpack.c.l.b16 %v903
        %v943 = vunpack.c.l.b16 %v904
        %v944 = vpack.c.b16 %v929, %v928
        %v945 = vpack.c.b16 %v931, %v930
        %v946 = vpack.c.b16 %v933, %v932
        %v947 = vpack.c.b16 %v935, %v934
        %v948 = vpack.c.b16 %v937, %v936
        %v949 = vpack.c.b16 %v939, %v938
        %v950 = vpack.c.b16 %v941, %v940
        %v951 = vpack.c.b16 %v943, %v942
        %960 = vmatprep.subr.bf16.mxu0 0
        %961 = vmatpush1.bf16.msra.mxu0 %v944
        %962 = vmatprep.subr.bf16.mxu0 0
        %963 = vmatpush1.bf16.msra.mxu0 %v945
        %964 = vmatprep.subr.bf16.mxu0 0
        %965 = vmatpush1.bf16.msra.mxu0 %v946
        %966 = vmatprep.subr.bf16.mxu0 0
        %967 = vmatpush1.bf16.msra.mxu0 %v947
        %968 = vmatprep.subr.bf16.mxu0 0
        %969 = vmatpush1.bf16.msra.mxu0 %v948
        %970 = vmatprep.subr.bf16.mxu0 0
        %971 = vmatpush1.bf16.msra.mxu0 %v949
        %972 = vmatprep.subr.bf16.mxu0 0
        %973 = vmatpush1.bf16.msra.mxu0 %v950
        %974 = vmatprep.subr.bf16.mxu0 0
        %975 = vmatpush1.bf16.msra.mxu0 %v951
        %976 = vmatprep.subr.bf16.mxu0 0
        %977 = vmatpush1.bf16.msra.mxu0 0
        %978 = vmatprep.subr.bf16.mxu0 0
        %979 = vmatpush1.bf16.msra.mxu0 0
        %980 = vmatprep.subr.bf16.mxu0 0
        %981 = vmatpush1.bf16.msra.mxu0 0
        %982 = vmatprep.subr.bf16.mxu0 0
        %983 = vmatpush1.bf16.msra.mxu0 0
        %984 = vmatprep.subr.bf16.mxu0 0
        %985 = vmatpush1.bf16.msra.mxu0 0
        %986 = vmatprep.subr.bf16.mxu0 0
        %987 = vmatpush1.bf16.msra.mxu0 0
        %988 = vmatprep.subr.bf16.mxu0 0
        %989 = vmatpush1.bf16.msra.mxu0 0
        %990 = vmatprep.subr.bf16.mxu0 0
        %991 = vmatpush1.bf16.msra.mxu0 0
        %992 = vmatprep.mubr.bf16.mxu0 0
        %993 = vmatmul.mubr.bf16.gmra.mrb[0].mxu0 %v888
        %v994 = vpop.f32.mrb[0].mxu0
        %v995 = vadd.f32 %v910, %v994
        %v996 = vpop.f32.mrb[0].mxu0
        %v997 = vpop.f32.mrb[0].mxu0
        %v998 = vadd.f32 %v910, %v997
        %v999 = vpop.f32.mrb[0].mxu0
        %1000 = vdwg.mxu0
        %1001 = vst.msk [vmem:[%s217] sm:$0xff] %vm284, %v995
        %1002 = vst.msk [vmem:[%s217 + $0x8] sm:$0xff] %vm284, %v998
        %s1003 = sand.u32 %s137, 1
        %s1004 = scalar_lea.sflag [#allocation3], %s1003
        %s1005 = sand.u32 %s137, 1
        %s1006 = smul.addr %s1005, 16
        %s1007 = scalar_lea.vmem [#allocation2], %s1006
        // Predicated region
        $region41: #{tpu_custom_call.1} parent=39 // pred_check
          %p1008 = pneg %p147
        $region42: #{tpu_custom_call.1} parent=39 // pred_check_branch
          %1010 = sbr.rel (%p1008) target = $region44
        $region43: #{tpu_custom_call.1} parent=39 // pred_region
          %s1012 = ssub.s32 256, 256
          %1013 = vsyncadd %s1004, %s1012
          %s1014 = smul.addr %s19, 2
          %s1015 = smul.addr %s1014, 128
          %s1016 = scalar_lea.hbm %s5, %s1015
          %s1017 = sshll.u32 %s1007, 4
          %s1018 = int_to_ptr.vmem [resolvable:$true] %s1017
          %1023 = dma.vmem_to_hbm [thread:$0]  %s1018, 256, %s1016, %s1004, 128, 128, 8
        $region44: #{tpu_custom_call.1} parent=39 // pred_fallthru
          _
      $region40: #{tpu_custom_call.1} parent=5 // pred_fallthru
        _
      %p1024 = scmp.le.s32.totalorder 2, %s14
      // Predicated region
      $region45: #{tpu_custom_call.1} parent=5 // pred_check
        %p1025 = pneg %p1024
      $region46: #{tpu_custom_call.1} parent=5 // pred_check_branch
        %1027 = sbr.rel (%p1025) target = $region48
      $region47: #{tpu_custom_call.1} parent=5 // pred_region
        %s1028 = ssub.s32 %s14, 2
        // Predicated region
        $region49: #{tpu_custom_call.1} parent=47 // pred_check
          %p1029 = pneg %p153
        $region50: #{tpu_custom_call.1} parent=47 // pred_check_branch
          %1031 = sbr.rel (%p1029) target = $region52
        $region51: #{tpu_custom_call.1} parent=47 // pred_region
          %s1032 = sand.u32 %s138, 1
          %s1033 = scalar_lea.sflag [#allocation3], %s1032
          %s1034 = sand.u32 %s138, 1
          %s1035 = smul.addr %s1034, 16
          %s1036 = scalar_lea.vmem [#allocation2], %s1035
          %1037 = dma.done %s1033, 256
        $region52: #{tpu_custom_call.1} parent=47 // pred_fallthru
          _
      $region48: #{tpu_custom_call.1} parent=5 // pred_fallthru
        _
    $region6: #{tpu_custom_call.1} parent=1 // loop_footer
      %s18 = sadd.s32 1, %s14
    $region7: #{tpu_custom_call.1} parent=1 // loop_footer_branch
      %13 = sbr.rel target = $region3
    $region8: #{tpu_custom_call.1} parent=1 // loop_exit
      _
    %1038 = vsyncpa [#allocation3], 1
    %s1039 = scalar_lea.sflag [#allocation3], 1
    %1040 = vsyncpa %s1039, 1

</llo_original>
